<compile_context>
chip_gen: v6e
topology: v6e:2x2x1
jax: 0.10.0
libtpu: 0.0.40
codegen_flags: <defaults>
</compile_context>

<pallas_src>
import jax
import jax.numpy as jnp
from jax.experimental import pallas as pl
from jax.experimental.pallas import tpu as pltpu


def _graphprop_kernel(hv_ref, adj_ref, deg_ref, gfeat_ref, w_ref, b_ref, out_ref):
    """All T propagation rounds in one invocation, fully VMEM-resident.

    hv_ref    : (N, H)            initial node states
    adj_ref   : (N, N)            dense in-adjacency (with edge multiplicity)
    deg_ref   : (N, 1)            in-degree per node
    gfeat_ref : (N, 2+Ef)         [sum of (etype-flag, edge-feats) over in-edges | deg]
    w_ref     : (T, 3H+2+Ef, 4H)  fused per-round weights (msg ∘ GRU-ih, plus GRU-hh)
    b_ref     : (T, 1, 4H)        fused per-round biases
    out_ref   : (N, H)            updated node states
    """
    T = w_ref.shape[0]
    H = hv_ref.shape[1]

    h = hv_ref[...].astype(jnp.float32)     # explicit f32 even if caller passes bf16
    adj = adj_ref[...]
    deg = deg_ref[...]
    gfeat = gfeat_ref[...]

    for t in range(T):  # num_prop_rounds is tiny & static -> fully unrolled
        neigh = jnp.dot(adj, h, preferred_element_type=jnp.float32)          # (N, H)
        # X = [deg*h | A@h | edata_sum | deg | h]   (N, 3H+2+Ef)
        x = jnp.concatenate([deg * h, neigh, gfeat, h], axis=1)
        # G = [gi_r+gh_r | gi_z+gh_z | gi_n | gh_n]  (N, 4H)  -- single MXU push
        g = jnp.dot(x, w_ref[t], preferred_element_type=jnp.float32) + b_ref[t]
        rz = jax.nn.sigmoid(g[:, : 2 * H])          # one sigmoid over contiguous r|z
        r = rz[:, :H]
        z = rz[:, H:]
        n = jnp.tanh(g[:, 2 * H : 3 * H] + r * g[:, 3 * H :])
        h = (1.0 - z) * n + z * h

    out_ref[...] = h


def pack_graphprop_params(params):
    """Pre-compose per-round weights. Model-parameter work: call ONCE, not per graph."""
    T, _, twoH = params["W_ih"].shape
    H = twoH // 2
    Wm = params["W_msg"].astype(jnp.float32)                  # (T, 2H, 2H+1+Ef)
    Ef = Wm.shape[2] - 2 * H - 1
    hp = jax.lax.Precision.HIGHEST

    # Message Linear, split by input block and pre-transposed to (in, out).
    w_dst = jnp.swapaxes(Wm[:, :, :H], 1, 2)                  # (T, H,     2H)
    w_src = jnp.swapaxes(Wm[:, :, H:2 * H], 1, 2)             # (T, H,     2H)
    w_ed = jnp.swapaxes(Wm[:, :, 2 * H:], 1, 2)               # (T, 1+Ef,  2H)
    b_msg = params["b_msg"].astype(jnp.float32)[:, None, :]   # (T, 1,     2H)
    # Row order must match X = [deg*h, A@h, edata_sum, deg, ...] in the kernel.
    w_pack = jnp.concatenate([w_dst, w_src, w_ed, b_msg], axis=1)   # (T, 2H+2+Ef, 2H)

    # Compose with the GRU input->gates weights:  gi = X @ (Wpack @ W_ih^T) + b_ih
    w_ih_t = jnp.swapaxes(params["W_ih"].astype(jnp.float32), 1, 2)       # (T, 2H, 3H)
    w_comb = jnp.einsum("tka,tab->tkb", w_pack, w_ih_t, precision=hp)     # (T, 2H+2+Ef, 3H)
    w_hh_t = jnp.swapaxes(params["W_hh"].astype(jnp.float32), 1, 2)       # (T, H, 3H)

    Kx = 2 * H + 2 + Ef
    # Fused gate-matmul column layout: [ r | z | gi_n | gh_n ]  (width 4H)
    top = jnp.concatenate([w_comb, jnp.zeros((T, Kx, H), jnp.float32)], axis=2)
    bot = jnp.concatenate(
        [w_hh_t[:, :, : 2 * H], jnp.zeros((T, H, H), jnp.float32), w_hh_t[:, :, 2 * H:]],
        axis=2)
    w_big = jnp.concatenate([top, bot], axis=1)               # (T, 3H+2+Ef, 4H)

    b_ih = params["b_ih"].astype(jnp.float32)
    b_hh = params["b_hh"].astype(jnp.float32)
    b_big = jnp.concatenate(
        [b_ih[:, : 2 * H] + b_hh[:, : 2 * H], b_ih[:, 2 * H:], b_hh[:, 2 * H:]],
        axis=1)[:, None, :]                                   # (T, 1, 4H)
    return w_big, b_big


def graph_prop_forward(hv, src, dst, etype_flag, efeat, packed):
    """GraphProp.forward on a flattened (homogeneous) edge list.

    hv         : (N, H)   node hidden states 'hv'
    src, dst   : (E,)     int32 edge endpoints (edge u->v is src=u, dst=v)
    etype_flag : (E,)     0.0 for 'corner_edge', 1.0 for 'room_adjacency_edge'
    efeat      : (E, Ef)  edge features 'e'
    packed     : output of pack_graphprop_params (pre-composed round weights)
    returns    : (N, H)   updated node hidden states
    """
    N, H = hv.shape
    E = src.shape[0]
    if E == 0:
        # PyTorch forward: `if g.num_edges() == 0: return` -> graph unchanged.
        return hv

    w_big, b_big = packed
    Ef = efeat.shape[1]

    # ---- graph-structure preprocessing (round- and hv-invariant) ----
    # TODO(synk): during autoregressive DGMG generation update adj/deg/edata_sum
    # incrementally instead of rebuilding via scatter-add on every call.
    adj = jnp.zeros((N, N), jnp.float32).at[dst, src].add(1.0)
    deg = jnp.zeros((N, 1), jnp.float32).at[dst, 0].add(1.0)
    edata = jnp.concatenate(
        [etype_flag[:, None].astype(jnp.float32), efeat.astype(jnp.float32)], axis=1)
    edata_sum = jnp.zeros((N, 1 + Ef), jnp.float32).at[dst].add(edata)
    gfeat = jnp.concatenate([edata_sum, deg], axis=1)          # (N, 2+Ef)

    # TODO(synk): for throughput, batch several graphs per call (block-diagonal
    # adjacency / stacked node rows) so M >= 128 and the output store is
    # full-lane; a single DGMG graph is too small to fill (8,128) tiles.
    vmem_specs = [pl.BlockSpec(memory_space=pltpu.MemorySpace.VMEM) for _ in range(6)]
    return pl.pallas_call(
        _graphprop_kernel,
        out_shape=jax.ShapeDtypeStruct((N, H), jnp.float32),
        in_specs=vmem_specs,
        out_specs=pl.BlockSpec(memory_space=pltpu.MemorySpace.VMEM),
    )(hv.astype(jnp.float32), adj, deg, gfeat, w_big, b_big)


def _reference_forward(hv, src, dst, etype_flag, efeat, params):
    """Pure-JAX literal transcription of GraphProp.forward (per-edge messages,
    per-node mailbox sum, GRUCell update) for correctness checking."""
    N, H = hv.shape
    T = params["W_msg"].shape[0]
    hv = hv.astype(jnp.float32)
    edata = jnp.concatenate([etype_flag[:, None].astype(jnp.float32), efeat], axis=1)
    for t in range(T):
        W = params["W_msg"][t]                              # (2H, 2H+1+Ef)
        b = params["b_msg"][t]                              # (2H,)
        msg_in = jnp.concatenate([hv[dst], hv[src], edata], axis=1)   # (E, 2H+1+Ef)
        per_edge = msg_in @ W.T + b                                    # (E, 2H)
        a = jnp.zeros((N, 2 * H), jnp.float32).at[dst].add(per_edge)
        gi = a @ params["W_ih"][t].T + params["b_ih"][t]
        gh = hv @ params["W_hh"][t].T + params["b_hh"][t]
        r = jax.nn.sigmoid(gi[:, :H] + gh[:, :H])
        z = jax.nn.sigmoid(gi[:, H:2 * H] + gh[:, H:2 * H])
        n = jnp.tanh(gi[:, 2 * H:] + r * gh[:, 2 * H:])
        hv = (1.0 - z) * n + z * hv
    return hv


def make_params(key, num_prop_rounds, node_hidden_size, edge_features_size):
    T, H, Ef = num_prop_rounds, node_hidden_size, edge_features_size
    in_msg = 2 * H + 1 + Ef
    ks = jax.random.split(key, 6)
    k1 = 1.0 / jnp.sqrt(jnp.float32(in_msg))
    k2 = 1.0 / jnp.sqrt(jnp.float32(H))
    return {
        "W_msg": jax.random.uniform(ks[0], (T, 2 * H, in_msg), jnp.float32, -k1, k1),
        "b_msg": jax.random.uniform(ks[1], (T, 2 * H), jnp.float32, -k1, k1),
        "W_ih": jax.random.uniform(ks[2], (T, 3 * H, 2 * H), jnp.float32, -k2, k2),
        "W_hh": jax.random.uniform(ks[3], (T, 3 * H, H), jnp.float32, -k2, k2),
        "b_ih": jax.random.uniform(ks[4], (T, 3 * H), jnp.float32, -k2, k2),
        "b_hh": jax.random.uniform(ks[5], (T, 3 * H), jnp.float32, -k2, k2),
    }


if __name__ == "__main__":
    num_prop_rounds = 2
    node_hidden_size = 32        # H
    edge_features_size = 7       # Ef
    num_nodes = 16               # N
    num_edges = 48               # E

    key = jax.random.PRNGKey(0)
    kp, kh, ks, kd, kf, ke = jax.random.split(key, 6)
    params = make_params(kp, num_prop_rounds, node_hidden_size, edge_features_size)
    packed = pack_graphprop_params(params)   # model-parameter prep: done once

    hv = jax.random.normal(kh, (num_nodes, node_hidden_size), jnp.float32)
    src = jax.random.randint(ks, (num_edges,), 0, num_nodes, jnp.int32)
    dst = jax.random.randint(kd, (num_edges,), 0, num_nodes, jnp.int32)
    # 0.0 -> 'corner_edge', 1.0 -> 'room_adjacency_edge' (the flag dgmg_msg prepends)
    etype_flag = jax.random.bernoulli(kf, 0.5, (num_edges,)).astype(jnp.float32)
    efeat = jax.random.normal(ke, (num_edges, edge_features_size), jnp.float32)

    out = graph_prop_forward(hv, src, dst, etype_flag, efeat, packed)
    out = jax.block_until_ready(out)

    ref = _reference_forward(hv, src, dst, etype_flag, efeat, params)
    assert out.shape == (num_nodes, node_hidden_size)
    max_err = jnp.max(jnp.abs(out - ref))
    assert jnp.allclose(out, ref, atol=1e-4, rtol=1e-4), (
        f"mismatch: max abs err {max_err}")

    print("KERNEL_OK")
</pallas_src>

<mosaic_0001>
module attributes {stable_mosaic.version = 11 : i64} {
  func.func @_graphprop_kernel(%arg0: memref<16x32xf32, #tpu.memory_space<vmem>>, %arg1: memref<16x16xf32, #tpu.memory_space<vmem>>, %arg2: memref<16x1xf32, #tpu.memory_space<vmem>>, %arg3: memref<16x9xf32, #tpu.memory_space<vmem>>, %arg4: memref<2x105x128xf32, #tpu.memory_space<vmem>>, %arg5: memref<2x1x128xf32, #tpu.memory_space<vmem>>, %arg6: memref<16x32xf32, #tpu.memory_space<vmem>>) attributes {dimension_semantics = [], scalar_prefetch = 0 : i64, scratch_operands = 0 : i64, tpu.core_type = #tpu.core_type<tc>} {
    %c0 = arith.constant 0 : index
    %c0_0 = arith.constant 0 : index
    %0 = vector.load %arg0[%c0, %c0_0] : memref<16x32xf32, #tpu.memory_space<vmem>>, vector<16x32xf32>
    %c0_1 = arith.constant 0 : index
    %c0_2 = arith.constant 0 : index
    %1 = vector.load %arg1[%c0_1, %c0_2] : memref<16x16xf32, #tpu.memory_space<vmem>>, vector<16x16xf32>
    %c0_3 = arith.constant 0 : index
    %c0_4 = arith.constant 0 : index
    %2 = vector.load %arg2[%c0_3, %c0_4] : memref<16x1xf32, #tpu.memory_space<vmem>>, vector<16x1xf32>
    %c0_5 = arith.constant 0 : index
    %c0_6 = arith.constant 0 : index
    %3 = vector.load %arg3[%c0_5, %c0_6] : memref<16x9xf32, #tpu.memory_space<vmem>>, vector<16x9xf32>
    %cst = arith.constant dense<0.000000e+00> : vector<16x32xf32>
    %4 = tpu.matmul %1, %0, %cst {dimension_numbers = #tpu.dot_dimension_numbers<[1], [0], [0], [1], [0, 0, 1, 1], [], []>} : vector<16x16xf32>, vector<16x32xf32>, vector<16x32xf32> -> vector<16x32xf32>
    %5 = vector.broadcast %2 : vector<16x1xf32> to vector<16x32xf32>
    %6 = arith.mulf %5, %0 : vector<16x32xf32>
    %7 = tpu.concatenate %6, %4, %3, %0 in 1 : vector<16x32xf32>, vector<16x32xf32>, vector<16x9xf32>, vector<16x32xf32> -> vector<16x105xf32>
    %c0_7 = arith.constant 0 : index
    %c0_8 = arith.constant 0 : index
    %c0_9 = arith.constant 0 : index
    %8 = vector.load %arg4[%c0_7, %c0_8, %c0_9] : memref<2x105x128xf32, #tpu.memory_space<vmem>>, vector<1x105x128xf32>
    %9 = vector.shape_cast %8 : vector<1x105x128xf32> to vector<105x128xf32>
    %cst_10 = arith.constant dense<0.000000e+00> : vector<16x128xf32>
    %10 = tpu.matmul %7, %9, %cst_10 {dimension_numbers = #tpu.dot_dimension_numbers<[1], [0], [0], [1], [0, 0, 1, 1], [], []>} : vector<16x105xf32>, vector<105x128xf32>, vector<16x128xf32> -> vector<16x128xf32>
    %c0_11 = arith.constant 0 : index
    %c0_12 = arith.constant 0 : index
    %c0_13 = arith.constant 0 : index
    %11 = vector.load %arg5[%c0_11, %c0_12, %c0_13] : memref<2x1x128xf32, #tpu.memory_space<vmem>>, vector<1x1x128xf32>
    %12 = vector.shape_cast %11 : vector<1x1x128xf32> to vector<1x128xf32>
    %13 = vector.broadcast %12 : vector<1x128xf32> to vector<16x128xf32>
    %14 = arith.addf %10, %13 : vector<16x128xf32>
    %15 = vector.extract_strided_slice %14 {offsets = [0, 0], sizes = [16, 64], strides = [1, 1]} : vector<16x128xf32> to vector<16x64xf32>
    %16 = arith.negf %15 : vector<16x64xf32>
    %17 = math.exp %16 : vector<16x64xf32>
    %cst_14 = arith.constant 1.000000e+00 : f32
    %18 = vector.broadcast %cst_14 : f32 to vector<16x64xf32>
    %19 = arith.addf %18, %17 : vector<16x64xf32>
    %20 = arith.divf %18, %19 : vector<16x64xf32>
    %21 = vector.extract_strided_slice %20 {offsets = [0, 0], sizes = [16, 32], strides = [1, 1]} : vector<16x64xf32> to vector<16x32xf32>
    %22 = vector.extract_strided_slice %20 {offsets = [0, 32], sizes = [16, 32], strides = [1, 1]} : vector<16x64xf32> to vector<16x32xf32>
    %23 = vector.extract_strided_slice %14 {offsets = [0, 64], sizes = [16, 32], strides = [1, 1]} : vector<16x128xf32> to vector<16x32xf32>
    %24 = vector.extract_strided_slice %14 {offsets = [0, 96], sizes = [16, 32], strides = [1, 1]} : vector<16x128xf32> to vector<16x32xf32>
    %25 = arith.mulf %21, %24 : vector<16x32xf32>
    %26 = arith.addf %23, %25 : vector<16x32xf32>
    %27 = math.tanh %26 : vector<16x32xf32>
    %cst_15 = arith.constant 1.000000e+00 : f32
    %28 = vector.broadcast %cst_15 : f32 to vector<16x32xf32>
    %29 = arith.subf %28, %22 : vector<16x32xf32>
    %30 = arith.mulf %29, %27 : vector<16x32xf32>
    %31 = arith.mulf %22, %0 : vector<16x32xf32>
    %32 = arith.addf %30, %31 : vector<16x32xf32>
    %cst_16 = arith.constant dense<0.000000e+00> : vector<16x32xf32>
    %33 = tpu.matmul %1, %32, %cst_16 {dimension_numbers = #tpu.dot_dimension_numbers<[1], [0], [0], [1], [0, 0, 1, 1], [], []>} : vector<16x16xf32>, vector<16x32xf32>, vector<16x32xf32> -> vector<16x32xf32>
    %34 = vector.broadcast %2 : vector<16x1xf32> to vector<16x32xf32>
    %35 = arith.mulf %34, %32 : vector<16x32xf32>
    %36 = tpu.concatenate %35, %33, %3, %32 in 1 : vector<16x32xf32>, vector<16x32xf32>, vector<16x9xf32>, vector<16x32xf32> -> vector<16x105xf32>
    %c1 = arith.constant 1 : index
    %c0_17 = arith.constant 0 : index
    %c0_18 = arith.constant 0 : index
    %37 = vector.load %arg4[%c1, %c0_17, %c0_18] : memref<2x105x128xf32, #tpu.memory_space<vmem>>, vector<1x105x128xf32>
    %38 = vector.shape_cast %37 : vector<1x105x128xf32> to vector<105x128xf32>
    %cst_19 = arith.constant dense<0.000000e+00> : vector<16x128xf32>
    %39 = tpu.matmul %36, %38, %cst_19 {dimension_numbers = #tpu.dot_dimension_numbers<[1], [0], [0], [1], [0, 0, 1, 1], [], []>} : vector<16x105xf32>, vector<105x128xf32>, vector<16x128xf32> -> vector<16x128xf32>
    %c1_20 = arith.constant 1 : index
    %c0_21 = arith.constant 0 : index
    %c0_22 = arith.constant 0 : index
    %40 = vector.load %arg5[%c1_20, %c0_21, %c0_22] : memref<2x1x128xf32, #tpu.memory_space<vmem>>, vector<1x1x128xf32>
    %41 = vector.shape_cast %40 : vector<1x1x128xf32> to vector<1x128xf32>
    %42 = vector.broadcast %41 : vector<1x128xf32> to vector<16x128xf32>
    %43 = arith.addf %39, %42 : vector<16x128xf32>
    %44 = vector.extract_strided_slice %43 {offsets = [0, 0], sizes = [16, 64], strides = [1, 1]} : vector<16x128xf32> to vector<16x64xf32>
    %45 = arith.negf %44 : vector<16x64xf32>
    %46 = math.exp %45 : vector<16x64xf32>
    %cst_23 = arith.constant 1.000000e+00 : f32
    %47 = vector.broadcast %cst_23 : f32 to vector<16x64xf32>
    %48 = arith.addf %47, %46 : vector<16x64xf32>
    %49 = arith.divf %47, %48 : vector<16x64xf32>
    %50 = vector.extract_strided_slice %49 {offsets = [0, 0], sizes = [16, 32], strides = [1, 1]} : vector<16x64xf32> to vector<16x32xf32>
    %51 = vector.extract_strided_slice %49 {offsets = [0, 32], sizes = [16, 32], strides = [1, 1]} : vector<16x64xf32> to vector<16x32xf32>
    %52 = vector.extract_strided_slice %43 {offsets = [0, 64], sizes = [16, 32], strides = [1, 1]} : vector<16x128xf32> to vector<16x32xf32>
    %53 = vector.extract_strided_slice %43 {offsets = [0, 96], sizes = [16, 32], strides = [1, 1]} : vector<16x128xf32> to vector<16x32xf32>
    %54 = arith.mulf %50, %53 : vector<16x32xf32>
    %55 = arith.addf %52, %54 : vector<16x32xf32>
    %56 = math.tanh %55 : vector<16x32xf32>
    %cst_24 = arith.constant 1.000000e+00 : f32
    %57 = vector.broadcast %cst_24 : f32 to vector<16x32xf32>
    %58 = arith.subf %57, %51 : vector<16x32xf32>
    %59 = arith.mulf %58, %56 : vector<16x32xf32>
    %60 = arith.mulf %51, %32 : vector<16x32xf32>
    %61 = arith.addf %59, %60 : vector<16x32xf32>
    %c0_25 = arith.constant 0 : index
    %c0_26 = arith.constant 0 : index
    %62 = vector.load %arg6[%c0_25, %c0_26] : memref<16x32xf32, #tpu.memory_space<vmem>>, vector<16x32xf32>
    tpu.vector_store %arg6[%c0_25, %c0_26], %61 {strides = array<i32>} : memref<16x32xf32, #tpu.memory_space<vmem>>, vector<16x32xf32>,
    return
  }
}

</mosaic_0001>

<llo_original>
// kernel: tpu_custom_call.1
$region0: #{tpu_custom_call.1}
  #allocation0 [shape = 'u32[]', space=smem, size = 0x4, offset = 0x4, fixed_abs, tag = 'smem constant byte address 0x4 - core index']
  #allocation1 [shape = 'u32[144,128]{1,0:T(1,128)}', space=vmem, size = 0x12000, scoped, tag = 'internal scratch']
  %s0 = inlined_call_operand.vmem [shape: f32[16,32], index: 0, kind: input, shape index: {}]
  %s1 = inlined_call_operand.vmem [shape: f32[16,16], index: 1, kind: input, shape index: {}]
  %s2 = inlined_call_operand.vmem [shape: f32[16,1], index: 2, kind: input, shape index: {}]
  %s3 = inlined_call_operand.vmem [shape: f32[16,9], index: 3, kind: input, shape index: {}]
  %s4 = inlined_call_operand.vmem [shape: f32[2,105,128], index: 4, kind: input, shape index: {}]
  %s5 = inlined_call_operand.vmem [shape: f32[2,1,128], index: 5, kind: input, shape index: {}]
  %s6 = inlined_call_operand.hbm [shape: f32[16,32], index: 6, kind: output, shape index: {}]
  %s7 = sld [smem:[#allocation0]]
  $region34: #{tpu_custom_call.1} parent=0
    _
  %s9 = ssub.s32 1, %s7
  %s10 = scalar_select 0, %s9, %s7
  $region1: #{tpu_custom_call.1} parent=0
    #allocation2 [shape = 'u8[8192]{0}', space=vmem, size = 0x2000, scoped, tag = 'output window, operand 0, single buffered']
    #allocation3 [shape = 's32[1]{0}', space=sflag, size = 0x4, scoped, tag = 'scoped memory for tpu_custom_call.1']
    %11 = vsyncpa [#allocation3], 0
    // Predicated region
    $region2: #{tpu_custom_call.1} parent=1 // pred_check
      _
    $region3: #{tpu_custom_call.1} parent=1 // pred_check_branch
      %13 = sbr.rel (0) target = $region5
    $region4: #{tpu_custom_call.1} parent=1 // pred_region
      _
    $region5: #{tpu_custom_call.1} parent=1 // pred_fallthru
      _
    // Predicated region
    $region6: #{tpu_custom_call.1} parent=1 // pred_check
      _
    $region7: #{tpu_custom_call.1} parent=1 // pred_check_branch
      %15 = sbr.rel (0) target = $region9
    $region8: #{tpu_custom_call.1} parent=1 // pred_region
      _
    $region9: #{tpu_custom_call.1} parent=1 // pred_fallthru
      _
    // Predicated region
    $region10: #{tpu_custom_call.1} parent=1 // pred_check
      _
    $region11: #{tpu_custom_call.1} parent=1 // pred_check_branch
      %17 = sbr.rel (0) target = $region13
    $region12: #{tpu_custom_call.1} parent=1 // pred_region
      _
    $region13: #{tpu_custom_call.1} parent=1 // pred_fallthru
      _
    // Predicated region
    $region14: #{tpu_custom_call.1} parent=1 // pred_check
      _
    $region15: #{tpu_custom_call.1} parent=1 // pred_check_branch
      %19 = sbr.rel (0) target = $region17
    $region16: #{tpu_custom_call.1} parent=1 // pred_region
      _
    $region17: #{tpu_custom_call.1} parent=1 // pred_fallthru
      _
    // Predicated region
    $region18: #{tpu_custom_call.1} parent=1 // pred_check
      _
    $region19: #{tpu_custom_call.1} parent=1 // pred_check_branch
      %21 = sbr.rel (0) target = $region21
    $region20: #{tpu_custom_call.1} parent=1 // pred_region
      _
    $region21: #{tpu_custom_call.1} parent=1 // pred_fallthru
      _
    // Predicated region
    $region22: #{tpu_custom_call.1} parent=1 // pred_check
      _
    $region23: #{tpu_custom_call.1} parent=1 // pred_check_branch
      %23 = sbr.rel (0) target = $region25
    $region24: #{tpu_custom_call.1} parent=1 // pred_region
      _
    $region25: #{tpu_custom_call.1} parent=1 // pred_fallthru
      _
    %v24 = vld [vmem:[%s0] sm:$0xff]
    %v25 = vld [vmem:[%s0 + $0x8] sm:$0xff]
    %v26 = vld [vmem:[%s1] sm:$0xff]
    %v27 = vld [vmem:[%s1 + $0x8] sm:$0xff]
    %v28 = vld [vmem:[%s2] sm:$0xff]
    %v29 = vld [vmem:[%s2 + $0x8] sm:$0xff]
    %v30 = vld [vmem:[%s3] sm:$0xff]
    %v31 = vld [vmem:[%s3 + $0x8] sm:$0xff]
    %vm32 = vcmask 130048
    %v34 = vsel %vm32, %v26, 0
    %v37 = vsel %vm32, %v27, 0
    %39 = vmatprep.subr.mxu0 0.0
    %40 = vmatpush1.msra.mxu0 0.0
    %41 = vmatprep.subr.mxu0 0.0
    %42 = vmatpush1.msra.mxu0 0.0
    %43 = vmatprep.subr.mxu0 0.0
    %44 = vmatpush1.msra.mxu0 0.0
    %45 = vmatprep.subr.mxu0 0.0
    %46 = vmatpush1.msra.mxu0 0.0
    %47 = vmatprep.subr.mxu0 0.0
    %48 = vmatpush1.msra.mxu0 0.0
    %49 = vmatprep.subr.mxu0 0.0
    %50 = vmatpush1.msra.mxu0 0.0
    %51 = vmatprep.subr.mxu0 0.0
    %52 = vmatpush1.msra.mxu0 0.0
    %53 = vmatprep.subr.mxu0 0.0
    %54 = vmatpush1.msra.mxu0 0.0
    %55 = vmatprep.subr.mxu0 0.0
    %56 = vmatpush1.msra.mxu0 0.0
    %57 = vmatprep.subr.mxu0 0.0
    %58 = vmatpush1.msra.mxu0 0.0
    %59 = vmatprep.subr.mxu0 0.0
    %60 = vmatpush1.msra.mxu0 0.0
    %61 = vmatprep.subr.mxu0 0.0
    %62 = vmatpush1.msra.mxu0 0.0
    %63 = vmatprep.subr.mxu0 0.0
    %64 = vmatpush1.msra.mxu0 0.0
    %65 = vmatprep.subr.mxu0 0.0
    %66 = vmatpush1.msra.mxu0 0.0
    %67 = vmatprep.subr.mxu0 0.0
    %68 = vmatpush1.msra.mxu0 %v25
    %69 = vmatprep.subr.mxu0 0.0
    %70 = vmatpush1.msra.mxu0 %v24
    %71 = vmatprep.subr.mxu0 0.0
    %72 = vmatpush2.msra.mxu0 0.0
    %73 = vmatprep.subr.mxu0 0.0
    %74 = vmatpush2.msra.mxu0 0.0
    %75 = vmatprep.subr.mxu0 0.0
    %76 = vmatpush2.msra.mxu0 0.0
    %77 = vmatprep.subr.mxu0 0.0
    %78 = vmatpush2.msra.mxu0 0.0
    %79 = vmatprep.subr.mxu0 0.0
    %80 = vmatpush2.msra.mxu0 0.0
    %81 = vmatprep.subr.mxu0 0.0
    %82 = vmatpush2.msra.mxu0 0.0
    %83 = vmatprep.subr.mxu0 0.0
    %84 = vmatpush2.msra.mxu0 0.0
    %85 = vmatprep.subr.mxu0 0.0
    %86 = vmatpush2.msra.mxu0 0.0
    %87 = vmatprep.subr.mxu0 0.0
    %88 = vmatpush2.msra.mxu0 0.0
    %89 = vmatprep.subr.mxu0 0.0
    %90 = vmatpush2.msra.mxu0 0.0
    %91 = vmatprep.subr.mxu0 0.0
    %92 = vmatpush2.msra.mxu0 0.0
    %93 = vmatprep.subr.mxu0 0.0
    %94 = vmatpush2.msra.mxu0 0.0
    %95 = vmatprep.subr.mxu0 0.0
    %96 = vmatpush2.msra.mxu0 0.0
    %97 = vmatprep.subr.mxu0 0.0
    %98 = vmatpush2.msra.mxu0 0.0
    %99 = vmatprep.subr.mxu0 0.0
    %100 = vmatpush2.msra.mxu0 0.0
    %101 = vmatprep.subr.mxu0 0.0
    %102 = vmatpush2.msra.mxu0 0.0
    %103 = vmatprep.mubr.f32.mxu0 0.0
    %104 = vmatmul.mubr.f32.gmra.mxu0 %v34
    %v105 = vpop.f32.mrf.mxu0
    %v106 = vadd.f32 0.0, %v105
    %v107 = vpop.f32.mrf.mxu0
    %108 = vmatprep.mubr.f32.mxu0 0.0
    %109 = vmatmul.mubr.f32.gmra.mxu0 %v37
    %v110 = vpop.f32.mrf.mxu0
    %v111 = vadd.f32 0.0, %v110
    %v112 = vpop.f32.mrf.mxu0
    %113 = vdwg.mxu0
    %115 = vset.pattern.permute.xlu0 0
    %116 = vperm.xlu0 %115, %v28
    %v117 = vpop.permute.xlu0 %116
    %120 = vset.pattern.permute.xlu0 0
    %121 = vperm.xlu0 %120, %v29
    %v122 = vpop.permute.xlu0 %121
    %v124 = vmul.f32 %v117, %v24
    %v125 = vmul.f32 %v122, %v25
    %128 = vrot.lane.b32.xlu0 %v106, 32
    %v129 = vpop.permute.xlu0 %128
    %130 = vrot.lane.b32.xlu0 %v111, 32
    %v131 = vpop.permute.xlu0 %130
    %136 = vrot.lane.b32.xlu0 %v30, 64
    %v137 = vpop.permute.xlu0 %136
    %138 = vrot.lane.b32.xlu0 %v31, 64
    %v139 = vpop.permute.xlu0 %138
    %144 = vrot.lane.b32.xlu0 %v24, 73
    %v145 = vpop.permute.xlu0 %144
    %146 = vrot.lane.b32.xlu0 %v25, 73
    %v147 = vpop.permute.xlu0 %146
    %vm150 = vcmask 261120
    %v151 = vsel %vm150, %v124, %v129
    %v152 = vsel %vm150, %v125, %v131
    %vm153 = vcmask 523264
    %v154 = vsel %vm153, %v151, %v137
    %v155 = vsel %vm153, %v152, %v139
    %vm156 = vcmask 596992
    %v157 = vsel %vm156, %v154, %v145
    %v158 = vsel %vm156, %v155, %v147
    %v159 = vld [vmem:[%s4] sm:$0xff]
    %v160 = vld [vmem:[%s4 + $0x8] sm:$0xff]
    %v161 = vld [vmem:[%s4 + $0x10] sm:$0xff]
    %v162 = vld [vmem:[%s4 + $0x18] sm:$0xff]
    %v163 = vld [vmem:[%s4 + $0x20] sm:$0xff]
    %v164 = vld [vmem:[%s4 + $0x28] sm:$0xff]
    %v165 = vld [vmem:[%s4 + $0x30] sm:$0xff]
    %v166 = vld [vmem:[%s4 + $0x38] sm:$0xff]
    %v167 = vld [vmem:[%s4 + $0x40] sm:$0xff]
    %v168 = vld [vmem:[%s4 + $0x48] sm:$0xff]
    %v169 = vld [vmem:[%s4 + $0x50] sm:$0xff]
    %v170 = vld [vmem:[%s4 + $0x58] sm:$0xff]
    %v171 = vld [vmem:[%s4 + $0x60] sm:$0xff]
    %v172 = vld [vmem:[%s4 + $0x68] sm:$0x1]
    %v173 = vld [vmem:[%s5] sm:$0x1]
    %v175 = vlaneseq
    %v176 = vshrl.u32 %v175, 7
    %v177 = vsub.s32 0, %v176
    %v178 = vrot.slane %v173, %v177
    %vm180 = vcmask 859136
    %v182 = vsel %vm180, %v157, 0
    %v185 = vsel %vm180, %v158, 0
    %vm187 = vcmask 1040384
    %v189 = vsel %vm187, %v172, 0
    %191 = vmatprep.subr.mxu0 0.0
    %192 = vmatpush1.msra.mxu0 0.0
    %193 = vmatprep.subr.mxu0 0.0
    %194 = vmatpush1.msra.mxu0 0.0
    %195 = vmatprep.subr.mxu0 0.0
    %196 = vmatpush1.msra.mxu0 %v189
    %197 = vmatprep.subr.mxu0 0.0
    %198 = vmatpush1.msra.mxu0 %v171
    %199 = vmatprep.subr.mxu0 0.0
    %200 = vmatpush1.msra.mxu0 %v170
    %201 = vmatprep.subr.mxu0 0.0
    %202 = vmatpush1.msra.mxu0 %v169
    %203 = vmatprep.subr.mxu0 0.0
    %204 = vmatpush1.msra.mxu0 %v168
    %205 = vmatprep.subr.mxu0 0.0
    %206 = vmatpush1.msra.mxu0 %v167
    %207 = vmatprep.subr.mxu0 0.0
    %208 = vmatpush1.msra.mxu0 %v166
    %209 = vmatprep.subr.mxu0 0.0
    %210 = vmatpush1.msra.mxu0 %v165
    %211 = vmatprep.subr.mxu0 0.0
    %212 = vmatpush1.msra.mxu0 %v164
    %213 = vmatprep.subr.mxu0 0.0
    %214 = vmatpush1.msra.mxu0 %v163
    %215 = vmatprep.subr.mxu0 0.0
    %216 = vmatpush1.msra.mxu0 %v162
    %217 = vmatprep.subr.mxu0 0.0
    %218 = vmatpush1.msra.mxu0 %v161
    %219 = vmatprep.subr.mxu0 0.0
    %220 = vmatpush1.msra.mxu0 %v160
    %221 = vmatprep.subr.mxu0 0.0
    %222 = vmatpush1.msra.mxu0 %v159
    %223 = vmatprep.subr.mxu0 0.0
    %224 = vmatpush2.msra.mxu0 0.0
    %225 = vmatprep.subr.mxu0 0.0
    %226 = vmatpush2.msra.mxu0 0.0
    %227 = vmatprep.subr.mxu0 0.0
    %228 = vmatpush2.msra.mxu0 0.0
    %229 = vmatprep.subr.mxu0 0.0
    %230 = vmatpush2.msra.mxu0 0.0
    %231 = vmatprep.subr.mxu0 0.0
    %232 = vmatpush2.msra.mxu0 0.0
    %233 = vmatprep.subr.mxu0 0.0
    %234 = vmatpush2.msra.mxu0 0.0
    %235 = vmatprep.subr.mxu0 0.0
    %236 = vmatpush2.msra.mxu0 0.0
    %237 = vmatprep.subr.mxu0 0.0
    %238 = vmatpush2.msra.mxu0 0.0
    %239 = vmatprep.subr.mxu0 0.0
    %240 = vmatpush2.msra.mxu0 0.0
    %241 = vmatprep.subr.mxu0 0.0
    %242 = vmatpush2.msra.mxu0 0.0
    %243 = vmatprep.subr.mxu0 0.0
    %244 = vmatpush2.msra.mxu0 0.0
    %245 = vmatprep.subr.mxu0 0.0
    %246 = vmatpush2.msra.mxu0 0.0
    %247 = vmatprep.subr.mxu0 0.0
    %248 = vmatpush2.msra.mxu0 0.0
    %249 = vmatprep.subr.mxu0 0.0
    %250 = vmatpush2.msra.mxu0 0.0
    %251 = vmatprep.subr.mxu0 0.0
    %252 = vmatpush2.msra.mxu0 0.0
    %253 = vmatprep.subr.mxu0 0.0
    %254 = vmatpush2.msra.mxu0 0.0
    %255 = vmatprep.mubr.f32.mxu0 0.0
    %256 = vmatmul.mubr.f32.gmra.mxu0 %v182
    %v257 = vpop.f32.mrf.mxu0
    %v258 = vadd.f32 %v178, %v257
    %v259 = vpop.f32.mrf.mxu0
    %260 = vmatprep.mubr.f32.mxu0 0.0
    %261 = vmatmul.mubr.f32.gmra.mxu0 %v185
    %v262 = vpop.f32.mrf.mxu0
    %v263 = vadd.f32 %v178, %v262
    %v264 = vpop.f32.mrf.mxu0
    %265 = vdwg.mxu0
    %v266 = vxor.u32 %v258, 2147483648
    %v267 = vxor.u32 %v263, 2147483648
    %v268 = vmul.f32 %v266, 1.442695
    %v269 = vpow.pop %v268
    %v270 = vmul.f32 %v267, 1.442695
    %v271 = vpow.pop %v270
    %v272 = vadd.f32 %v269, 1.0
    %v273 = vadd.f32 %v271, 1.0
    %v274 = vrcp.pop %v272
    %v275 = vmul.f32 1.0, %v274
    %v276 = vrcp.pop %v273
    %v277 = vmul.f32 1.0, %v276
    %280 = vrot.lane.b32.xlu0 %v258, 32
    %v281 = vpop.permute.xlu0 %280
    %282 = vrot.lane.b32.xlu0 %v263, 32
    %v283 = vpop.permute.xlu0 %282
    %v286 = vmul.f32 %v275, %v281
    %v287 = vmul.f32 %v277, %v283
    %290 = vrot.lane.b32.xlu0 %v286, 64
    %v291 = vpop.permute.xlu0 %290
    %292 = vrot.lane.b32.xlu0 %v287, 64
    %v293 = vpop.permute.xlu0 %292
    %v296 = vadd.f32 %v258, %v291
    %v297 = vadd.f32 %v263, %v293
    %v298 = vtanh.pop %v296
    %v299 = vtanh.pop %v297
    %v300 = vsub.f32 1.0, %v275
    %v301 = vsub.f32 1.0, %v277
    %304 = vrot.lane.b32.xlu0 %v298, 96
    %v305 = vpop.permute.xlu0 %304
    %306 = vrot.lane.b32.xlu0 %v299, 96
    %v307 = vpop.permute.xlu0 %306
    %v310 = vmul.f32 %v300, %v305
    %v311 = vmul.f32 %v301, %v307
    %312 = vrot.lane.b32.xlu0 %v24, 32
    %v313 = vpop.permute.xlu0 %312
    %314 = vrot.lane.b32.xlu0 %v25, 32
    %v315 = vpop.permute.xlu0 %314
    %v318 = vmul.f32 %v275, %v313
    %v319 = vmul.f32 %v277, %v315
    %v320 = vadd.f32 %v310, %v318
    %v321 = vadd.f32 %v311, %v319
    %324 = vrot.lane.b32.xlu0 %v320, 96
    %v325 = vpop.permute.xlu0 %324
    %326 = vrot.lane.b32.xlu0 %v321, 96
    %v327 = vpop.permute.xlu0 %326
    %330 = vmatprep.subr.mxu0 0.0
    %331 = vmatpush1.msra.mxu0 0.0
    %332 = vmatprep.subr.mxu0 0.0
    %333 = vmatpush1.msra.mxu0 0.0
    %334 = vmatprep.subr.mxu0 0.0
    %335 = vmatpush1.msra.mxu0 0.0
    %336 = vmatprep.subr.mxu0 0.0
    %337 = vmatpush1.msra.mxu0 0.0
    %338 = vmatprep.subr.mxu0 0.0
    %339 = vmatpush1.msra.mxu0 0.0
    %340 = vmatprep.subr.mxu0 0.0
    %341 = vmatpush1.msra.mxu0 0.0
    %342 = vmatprep.subr.mxu0 0.0
    %343 = vmatpush1.msra.mxu0 0.0
    %344 = vmatprep.subr.mxu0 0.0
    %345 = vmatpush1.msra.mxu0 0.0
    %346 = vmatprep.subr.mxu0 0.0
    %347 = vmatpush1.msra.mxu0 0.0
    %348 = vmatprep.subr.mxu0 0.0
    %349 = vmatpush1.msra.mxu0 0.0
    %350 = vmatprep.subr.mxu0 0.0
    %351 = vmatpush1.msra.mxu0 0.0
    %352 = vmatprep.subr.mxu0 0.0
    %353 = vmatpush1.msra.mxu0 0.0
    %354 = vmatprep.subr.mxu0 0.0
    %355 = vmatpush1.msra.mxu0 0.0
    %356 = vmatprep.subr.mxu0 0.0
    %357 = vmatpush1.msra.mxu0 0.0
    %358 = vmatprep.subr.mxu0 0.0
    %359 = vmatpush1.msra.mxu0 %v327
    %360 = vmatprep.subr.mxu0 0.0
    %361 = vmatpush1.msra.mxu0 %v325
    %362 = vmatprep.subr.mxu0 0.0
    %363 = vmatpush2.msra.mxu0 0.0
    %364 = vmatprep.subr.mxu0 0.0
    %365 = vmatpush2.msra.mxu0 0.0
    %366 = vmatprep.subr.mxu0 0.0
    %367 = vmatpush2.msra.mxu0 0.0
    %368 = vmatprep.subr.mxu0 0.0
    %369 = vmatpush2.msra.mxu0 0.0
    %370 = vmatprep.subr.mxu0 0.0
    %371 = vmatpush2.msra.mxu0 0.0
    %372 = vmatprep.subr.mxu0 0.0
    %373 = vmatpush2.msra.mxu0 0.0
    %374 = vmatprep.subr.mxu0 0.0
    %375 = vmatpush2.msra.mxu0 0.0
    %376 = vmatprep.subr.mxu0 0.0
    %377 = vmatpush2.msra.mxu0 0.0
    %378 = vmatprep.subr.mxu0 0.0
    %379 = vmatpush2.msra.mxu0 0.0
    %380 = vmatprep.subr.mxu0 0.0
    %381 = vmatpush2.msra.mxu0 0.0
    %382 = vmatprep.subr.mxu0 0.0
    %383 = vmatpush2.msra.mxu0 0.0
    %384 = vmatprep.subr.mxu0 0.0
    %385 = vmatpush2.msra.mxu0 0.0
    %386 = vmatprep.subr.mxu0 0.0
    %387 = vmatpush2.msra.mxu0 0.0
    %388 = vmatprep.subr.mxu0 0.0
    %389 = vmatpush2.msra.mxu0 0.0
    %390 = vmatprep.subr.mxu0 0.0
    %391 = vmatpush2.msra.mxu0 0.0
    %392 = vmatprep.subr.mxu0 0.0
    %393 = vmatpush2.msra.mxu0 0.0
    %394 = vmatprep.mubr.f32.mxu0 0.0
    %395 = vmatmul.mubr.f32.gmra.mxu0 %v34
    %v396 = vpop.f32.mrf.mxu0
    %v397 = vadd.f32 0.0, %v396
    %v398 = vpop.f32.mrf.mxu0
    %399 = vmatprep.mubr.f32.mxu0 0.0
    %400 = vmatmul.mubr.f32.gmra.mxu0 %v37
    %v401 = vpop.f32.mrf.mxu0
    %v402 = vadd.f32 0.0, %v401
    %v403 = vpop.f32.mrf.mxu0
    %404 = vdwg.mxu0
    %v405 = vmul.f32 %v117, %v320
    %v406 = vmul.f32 %v122, %v321
    %409 = vrot.lane.b32.xlu0 %v405, 96
    %v410 = vpop.permute.xlu0 %409
    %411 = vrot.lane.b32.xlu0 %v406, 96
    %v412 = vpop.permute.xlu0 %411
    %417 = vrot.lane.b32.xlu0 %v397, 32
    %v418 = vpop.permute.xlu0 %417
    %419 = vrot.lane.b32.xlu0 %v402, 32
    %v420 = vpop.permute.xlu0 %419
    %423 = vrot.lane.b32.xlu0 %v320, 41
    %v424 = vpop.permute.xlu0 %423
    %425 = vrot.lane.b32.xlu0 %v321, 41
    %v426 = vpop.permute.xlu0 %425
    %v429 = vsel %vm150, %v410, %v418
    %v430 = vsel %vm150, %v412, %v420
    %v431 = vsel %vm153, %v429, %v137
    %v432 = vsel %vm153, %v430, %v139
    %v433 = vsel %vm156, %v431, %v424
    %v434 = vsel %vm156, %v432, %v426
    %s435 = scalar_lea.vmem %s4, 112
    %v436 = vld [vmem:[%s435] sm:$0xff]
    %v437 = vld [vmem:[%s435 + $0x8] sm:$0xff]
    %v438 = vld [vmem:[%s435 + $0x10] sm:$0xff]
    %v439 = vld [vmem:[%s435 + $0x18] sm:$0xff]
    %v440 = vld [vmem:[%s435 + $0x20] sm:$0xff]
    %v441 = vld [vmem:[%s435 + $0x28] sm:$0xff]
    %v442 = vld [vmem:[%s435 + $0x30] sm:$0xff]
    %v443 = vld [vmem:[%s435 + $0x38] sm:$0xff]
    %v444 = vld [vmem:[%s435 + $0x40] sm:$0xff]
    %v445 = vld [vmem:[%s435 + $0x48] sm:$0xff]
    %v446 = vld [vmem:[%s435 + $0x50] sm:$0xff]
    %v447 = vld [vmem:[%s435 + $0x58] sm:$0xff]
    %v448 = vld [vmem:[%s435 + $0x60] sm:$0xff]
    %v449 = vld [vmem:[%s435 + $0x68] sm:$0x1]
    %s450 = scalar_lea.vmem %s5, 1
    %v451 = vld [vmem:[%s450] sm:$0x1]
    %v453 = vlaneseq
    %v454 = vshrl.u32 %v453, 7
    %v455 = vsub.s32 0, %v454
    %v456 = vrot.slane %v451, %v455
    %v459 = vsel %vm180, %v433, 0
    %v462 = vsel %vm180, %v434, 0
    %v465 = vsel %vm187, %v449, 0
    %467 = vmatprep.subr.mxu0 0.0
    %468 = vmatpush1.msra.mxu0 0.0
    %469 = vmatprep.subr.mxu0 0.0
    %470 = vmatpush1.msra.mxu0 0.0
    %471 = vmatprep.subr.mxu0 0.0
    %472 = vmatpush1.msra.mxu0 %v465
    %473 = vmatprep.subr.mxu0 0.0
    %474 = vmatpush1.msra.mxu0 %v448
    %475 = vmatprep.subr.mxu0 0.0
    %476 = vmatpush1.msra.mxu0 %v447
    %477 = vmatprep.subr.mxu0 0.0
    %478 = vmatpush1.msra.mxu0 %v446
    %479 = vmatprep.subr.mxu0 0.0
    %480 = vmatpush1.msra.mxu0 %v445
    %481 = vmatprep.subr.mxu0 0.0
    %482 = vmatpush1.msra.mxu0 %v444
    %483 = vmatprep.subr.mxu0 0.0
    %484 = vmatpush1.msra.mxu0 %v443
    %485 = vmatprep.subr.mxu0 0.0
    %486 = vmatpush1.msra.mxu0 %v442
    %487 = vmatprep.subr.mxu0 0.0
    %488 = vmatpush1.msra.mxu0 %v441
    %489 = vmatprep.subr.mxu0 0.0
    %490 = vmatpush1.msra.mxu0 %v440
    %491 = vmatprep.subr.mxu0 0.0
    %492 = vmatpush1.msra.mxu0 %v439
    %493 = vmatprep.subr.mxu0 0.0
    %494 = vmatpush1.msra.mxu0 %v438
    %495 = vmatprep.subr.mxu0 0.0
    %496 = vmatpush1.msra.mxu0 %v437
    %497 = vmatprep.subr.mxu0 0.0
    %498 = vmatpush1.msra.mxu0 %v436
    %499 = vmatprep.subr.mxu0 0.0
    %500 = vmatpush2.msra.mxu0 0.0
    %501 = vmatprep.subr.mxu0 0.0
    %502 = vmatpush2.msra.mxu0 0.0
    %503 = vmatprep.subr.mxu0 0.0
    %504 = vmatpush2.msra.mxu0 0.0
    %505 = vmatprep.subr.mxu0 0.0
    %506 = vmatpush2.msra.mxu0 0.0
    %507 = vmatprep.subr.mxu0 0.0
    %508 = vmatpush2.msra.mxu0 0.0
    %509 = vmatprep.subr.mxu0 0.0
    %510 = vmatpush2.msra.mxu0 0.0
    %511 = vmatprep.subr.mxu0 0.0
    %512 = vmatpush2.msra.mxu0 0.0
    %513 = vmatprep.subr.mxu0 0.0
    %514 = vmatpush2.msra.mxu0 0.0
    %515 = vmatprep.subr.mxu0 0.0
    %516 = vmatpush2.msra.mxu0 0.0
    %517 = vmatprep.subr.mxu0 0.0
    %518 = vmatpush2.msra.mxu0 0.0
    %519 = vmatprep.subr.mxu0 0.0
    %520 = vmatpush2.msra.mxu0 0.0
    %521 = vmatprep.subr.mxu0 0.0
    %522 = vmatpush2.msra.mxu0 0.0
    %523 = vmatprep.subr.mxu0 0.0
    %524 = vmatpush2.msra.mxu0 0.0
    %525 = vmatprep.subr.mxu0 0.0
    %526 = vmatpush2.msra.mxu0 0.0
    %527 = vmatprep.subr.mxu0 0.0
    %528 = vmatpush2.msra.mxu0 0.0
    %529 = vmatprep.subr.mxu0 0.0
    %530 = vmatpush2.msra.mxu0 0.0
    %531 = vmatprep.mubr.f32.mxu0 0.0
    %532 = vmatmul.mubr.f32.gmra.mxu0 %v459
    %v533 = vpop.f32.mrf.mxu0
    %v534 = vadd.f32 %v456, %v533
    %v535 = vpop.f32.mrf.mxu0
    %536 = vmatprep.mubr.f32.mxu0 0.0
    %537 = vmatmul.mubr.f32.gmra.mxu0 %v462
    %v538 = vpop.f32.mrf.mxu0
    %v539 = vadd.f32 %v456, %v538
    %v540 = vpop.f32.mrf.mxu0
    %541 = vdwg.mxu0
    %v542 = vxor.u32 %v534, 2147483648
    %v543 = vxor.u32 %v539, 2147483648
    %v544 = vmul.f32 %v542, 1.442695
    %v545 = vpow.pop %v544
    %v546 = vmul.f32 %v543, 1.442695
    %v547 = vpow.pop %v546
    %v548 = vadd.f32 %v545, 1.0
    %v549 = vadd.f32 %v547, 1.0
    %v550 = vrcp.pop %v548
    %v551 = vmul.f32 1.0, %v550
    %v552 = vrcp.pop %v549
    %v553 = vmul.f32 1.0, %v552
    %556 = vrot.lane.b32.xlu0 %v534, 32
    %v557 = vpop.permute.xlu0 %556
    %558 = vrot.lane.b32.xlu0 %v539, 32
    %v559 = vpop.permute.xlu0 %558
    %v562 = vmul.f32 %v551, %v557
    %v563 = vmul.f32 %v553, %v559
    %566 = vrot.lane.b32.xlu0 %v562, 64
    %v567 = vpop.permute.xlu0 %566
    %568 = vrot.lane.b32.xlu0 %v563, 64
    %v569 = vpop.permute.xlu0 %568
    %v572 = vadd.f32 %v534, %v567
    %v573 = vadd.f32 %v539, %v569
    %v574 = vtanh.pop %v572
    %v575 = vtanh.pop %v573
    %v576 = vsub.f32 1.0, %v551
    %v577 = vsub.f32 1.0, %v553
    %580 = vrot.lane.b32.xlu0 %v574, 96
    %v581 = vpop.permute.xlu0 %580
    %582 = vrot.lane.b32.xlu0 %v575, 96
    %v583 = vpop.permute.xlu0 %582
    %v586 = vmul.f32 %v576, %v581
    %v587 = vmul.f32 %v577, %v583
    %v588 = vmul.f32 %v551, %v320
    %v589 = vmul.f32 %v553, %v321
    %v590 = vadd.f32 %v586, %v588
    %v591 = vadd.f32 %v587, %v589
    %594 = vrot.lane.b32.xlu0 %v590, 96
    %v595 = vpop.permute.xlu0 %594
    %596 = vrot.lane.b32.xlu0 %v591, 96
    %v597 = vpop.permute.xlu0 %596
    %600 = vst.msk [vmem:[#allocation2] sm:$0xff] %vm150, %v595
    %601 = vst.msk [vmem:[#allocation2 + $0x8] sm:$0xff] %vm150, %v597
    // Predicated region
    $region26: #{tpu_custom_call.1} parent=1 // pred_check
      _
    $region27: #{tpu_custom_call.1} parent=1 // pred_check_branch
      %603 = sbr.rel (0) target = $region29
    $region28: #{tpu_custom_call.1} parent=1 // pred_region
      %s605 = ssub.s32 256, 256
      %606 = vsyncadd [#allocation3], %s605
      %s607 = sshll.u32 [#allocation2], 4
      %s608 = int_to_ptr.vmem [resolvable:$true] %s607
      %613 = dma.vmem_to_hbm [thread:$0]  %s608, 256, %s6, [#allocation3], 128, 128, 8
    $region29: #{tpu_custom_call.1} parent=1 // pred_fallthru
      _
    // Predicated region
    $region30: #{tpu_custom_call.1} parent=1 // pred_check
      _
    $region31: #{tpu_custom_call.1} parent=1 // pred_check_branch
      %615 = sbr.rel (0) target = $region33
    $region32: #{tpu_custom_call.1} parent=1 // pred_region
      %616 = dma.done [#allocation3], 256
    $region33: #{tpu_custom_call.1} parent=1 // pred_fallthru
      _
    %617 = vsyncpa [#allocation3], 1

</llo_original>
